<compile_context>
chip_gen: v5e
topology: v5e:2x2
jax: 0.10.0
libtpu: 0.0.40
codegen_flags: <defaults>
</compile_context>

<pallas_src>
import jax
import jax.numpy as jnp
from jax.experimental import pallas as pl
from jax.experimental.pallas import tpu as pltpu


HIDDEN = 256


def critic_kernel(state_ref, action_ref, w1s_ref, w1a_ref, w25_ref, w36_ref,
                  b_ref, q_ref):
    # Bias slab (f32, tiny): row 0 = b1||b4, row 1 = b2||b5, row 2[:2] = [b3, b6].
    b = b_ref[...]
    b14 = b[0:1, :]                     # (1, 512)
    b25 = b[1:2, :]                     # (1, 512)
    b36 = b[2:3, 0:2]                   # (1, 2)

    # ---- layer 1, both Q-heads fused: sa @ [w1 | w4] as split state/action dots
    s_bf = state_ref[...].astype(jnp.bfloat16)
    a_bf = action_ref[...].astype(jnp.bfloat16)
    hg = (jnp.dot(s_bf, w1s_ref[...], preferred_element_type=jnp.float32)
          + jnp.dot(a_bf, w1a_ref[...], preferred_element_type=jnp.float32)
          + b14)
    hg = jnp.maximum(hg, 0.0).astype(jnp.bfloat16)            # (B, 512)

    # ---- layer 2: h @ w2 and g @ w5 (weights stacked in one (512, 256) ref) ---
    h2 = jnp.dot(hg[:, :HIDDEN], w25_ref[pl.ds(0, HIDDEN), :],
                 preferred_element_type=jnp.float32)
    g2 = jnp.dot(hg[:, HIDDEN:], w25_ref[pl.ds(HIDDEN, HIDDEN), :],
                 preferred_element_type=jnp.float32)
    h2 = jnp.maximum(h2 + b25[:, :HIDDEN], 0.0)               # (B, 256) f32
    g2 = jnp.maximum(g2 + b25[:, HIDDEN:], 0.0)               # (B, 256) f32

    # ---- layer 3, both Q-heads fused: [h | g] @ (512, 2) -> (B, 2) ------------
    hg2 = jnp.concatenate([h2, g2], axis=1).astype(jnp.bfloat16)
    q = jnp.dot(hg2, w36_ref[...], preferred_element_type=jnp.float32) + b36
    q_ref[...] = q.astype(q_ref.dtype)


def critic_forward(state, action, packed_params):
    """Pallas implementation of Critic.forward: returns (q1, q2)."""
    w1s, w1a, w25, w36, b_all = packed_params
    batch = state.shape[0]

    # Pad batch up to a multiple of 8 sublanes (f32 tile height).
    bp = max(8, ((batch + 7) // 8) * 8)
    if bp != batch:
        pad = bp - batch
        state = jnp.pad(state, ((0, pad), (0, 0)))
        action = jnp.pad(action, ((0, pad), (0, 0)))

    vmem_spec = pl.BlockSpec(memory_space=pltpu.MemorySpace.VMEM)
    q = pl.pallas_call(
        critic_kernel,
        out_shape=jax.ShapeDtypeStruct((bp, 2), jnp.float32),
        in_specs=[vmem_spec] * 7,
        out_specs=vmem_spec,
    )(state, action, w1s, w1a, w25, w36, b_all)

    return q[:batch, 0:1], q[:batch, 1:2]


def init_critic_params(key, state_dim, action_dim):
    """PyTorch-style uniform(-1/sqrt(fan_in), 1/sqrt(fan_in)) init.

    Weights stored as (in_features, out_features); biases as (1, out_features).
    """
    in_dim = state_dim + action_dim
    dims = [
        (in_dim, HIDDEN), (HIDDEN, HIDDEN), (HIDDEN, 1),   # Q1: l1, l2, l3
        (in_dim, HIDDEN), (HIDDEN, HIDDEN), (HIDDEN, 1),   # Q2: l4, l5, l6
    ]
    params = []
    for (fan_in, fan_out) in dims:
        key, kw, kb = jax.random.split(key, 3)
        bound = 1.0 / jnp.sqrt(jnp.float32(fan_in))
        w = jax.random.uniform(kw, (fan_in, fan_out), jnp.float32, -bound, bound)
        b = jax.random.uniform(kb, (1, fan_out), jnp.float32, -bound, bound)
        params.extend([w, b])
    return tuple(params)


def pack_critic_params(params, state_dim):
    """Pack 12 per-layer params into 5 kernel inputs (bf16 weights, f32 biases)."""
    (w1, b1, w2, b2, w3, b3, w4, b4, w5, b5, w6, b6) = params

    # Fused layer-1 weight, split along the input dim so no concat is needed.
    w14 = jnp.concatenate([w1, w4], axis=1)                       # (in_dim, 512)
    w1s = w14[:state_dim].astype(jnp.bfloat16)                    # (state_dim, 512)
    w1a = w14[state_dim:].astype(jnp.bfloat16)                    # (action_dim, 512)

    # Layer-2 weights stacked along rows.
    w25 = jnp.concatenate([w2, w5], axis=0).astype(jnp.bfloat16)  # (512, 256)

    # Fused output layer: col 0 = w3 (rows 0:256), col 1 = w6 (rows 256:512).
    zeros = jnp.zeros((HIDDEN, 1), jnp.float32)
    w36 = jnp.concatenate(
        [jnp.concatenate([w3, zeros], axis=1),
         jnp.concatenate([zeros, w6], axis=1)], axis=0).astype(jnp.bfloat16)

    # Bias slab: row 0 = b1||b4, row 1 = b2||b5, row 2[:2] = [b3, b6].
    b_all = jnp.zeros((3, 2 * HIDDEN), jnp.float32)
    b_all = b_all.at[0, :HIDDEN].set(b1[0]).at[0, HIDDEN:].set(b4[0])
    b_all = b_all.at[1, :HIDDEN].set(b2[0]).at[1, HIDDEN:].set(b5[0])
    b_all = b_all.at[2, 0].set(b3[0, 0]).at[2, 1].set(b6[0, 0])

    return (w1s, w1a, w25, w36, b_all)


def critic_forward_ref(state, action, params):
    """Plain-JAX reference emulating the kernel's bf16-weight / f32-accum math."""
    (w1, b1, w2, b2, w3, b3, w4, b4, w5, b5, w6, b6) = params

    def lin(x, w, b):
        return jnp.dot(x.astype(jnp.bfloat16), w.astype(jnp.bfloat16),
                       preferred_element_type=jnp.float32) + b

    sa = jnp.concatenate([state, action], axis=1)
    h = jnp.maximum(lin(sa, w1, b1), 0.0)
    h = jnp.maximum(lin(h, w2, b2), 0.0)
    q1 = lin(h, w3, b3)
    g = jnp.maximum(lin(sa, w4, b4), 0.0)
    g = jnp.maximum(lin(g, w5, b5), 0.0)
    q2 = lin(g, w6, b6)
    return q1, q2


if __name__ == "__main__":
    batch, state_dim, action_dim = 2, 12, 4

    key = jax.random.PRNGKey(0)
    key, ks, ka = jax.random.split(key, 3)
    state = jax.random.normal(ks, (batch, state_dim), jnp.float32)
    action = jax.random.normal(ka, (batch, action_dim), jnp.float32)

    params = init_critic_params(key, state_dim, action_dim)
    packed = pack_critic_params(params, state_dim)

    q1, q2 = critic_forward(state, action, packed)
    jax.block_until_ready((q1, q2))

    q1_ref, q2_ref = critic_forward_ref(state, action, params)
    assert q1.shape == (batch, 1) and q2.shape == (batch, 1)
    assert jnp.allclose(q1, q1_ref, atol=1e-2, rtol=1e-2)
    assert jnp.allclose(q2, q2_ref, atol=1e-2, rtol=1e-2)

    print("KERNEL_OK")
</pallas_src>

<mosaic_0001>
module attributes {stable_mosaic.version = 11 : i64} {
  func.func @critic_kernel(%arg0: memref<8x12xf32, #tpu.memory_space<vmem>>, %arg1: memref<8x4xf32, #tpu.memory_space<vmem>>, %arg2: memref<12x512xbf16, #tpu.memory_space<vmem>>, %arg3: memref<4x512xbf16, #tpu.memory_space<vmem>>, %arg4: memref<512x256xbf16, #tpu.memory_space<vmem>>, %arg5: memref<512x2xbf16, #tpu.memory_space<vmem>>, %arg6: memref<3x512xf32, #tpu.memory_space<vmem>>, %arg7: memref<8x2xf32, #tpu.memory_space<vmem>>) attributes {dimension_semantics = [], scalar_prefetch = 0 : i64, scratch_operands = 0 : i64, tpu.core_type = #tpu.core_type<tc>} {
    %c0 = arith.constant 0 : index
    %c0_0 = arith.constant 0 : index
    %0 = vector.load %arg6[%c0, %c0_0] : memref<3x512xf32, #tpu.memory_space<vmem>>, vector<3x512xf32>
    %1 = vector.extract_strided_slice %0 {offsets = [0, 0], sizes = [1, 512], strides = [1, 1]} : vector<3x512xf32> to vector<1x512xf32>
    %2 = vector.extract_strided_slice %0 {offsets = [1, 0], sizes = [1, 512], strides = [1, 1]} : vector<3x512xf32> to vector<1x512xf32>
    %3 = vector.extract_strided_slice %0 {offsets = [2, 0], sizes = [1, 2], strides = [1, 1]} : vector<3x512xf32> to vector<1x2xf32>
    %c0_1 = arith.constant 0 : index
    %c0_2 = arith.constant 0 : index
    %4 = vector.load %arg0[%c0_1, %c0_2] : memref<8x12xf32, #tpu.memory_space<vmem>>, vector<8x12xf32>
    %5 = arith.truncf %4 : vector<8x12xf32> to vector<8x12xbf16>
    %c0_3 = arith.constant 0 : index
    %c0_4 = arith.constant 0 : index
    %6 = vector.load %arg1[%c0_3, %c0_4] : memref<8x4xf32, #tpu.memory_space<vmem>>, vector<8x4xf32>
    %7 = arith.truncf %6 : vector<8x4xf32> to vector<8x4xbf16>
    %c0_5 = arith.constant 0 : index
    %c0_6 = arith.constant 0 : index
    %8 = vector.load %arg2[%c0_5, %c0_6] : memref<12x512xbf16, #tpu.memory_space<vmem>>, vector<12x512xbf16>
    %cst = arith.constant dense<0.000000e+00> : vector<8x512xf32>
    %9 = tpu.matmul %5, %8, %cst {dimension_numbers = #tpu.dot_dimension_numbers<[1], [0], [0], [1], [0, 0, 1, 1], [], []>} : vector<8x12xbf16>, vector<12x512xbf16>, vector<8x512xf32> -> vector<8x512xf32>
    %c0_7 = arith.constant 0 : index
    %c0_8 = arith.constant 0 : index
    %10 = vector.load %arg3[%c0_7, %c0_8] : memref<4x512xbf16, #tpu.memory_space<vmem>>, vector<4x512xbf16>
    %cst_9 = arith.constant dense<0.000000e+00> : vector<8x512xf32>
    %11 = tpu.matmul %7, %10, %cst_9 {dimension_numbers = #tpu.dot_dimension_numbers<[1], [0], [0], [1], [0, 0, 1, 1], [], []>} : vector<8x4xbf16>, vector<4x512xbf16>, vector<8x512xf32> -> vector<8x512xf32>
    %12 = arith.addf %9, %11 : vector<8x512xf32>
    %13 = vector.broadcast %1 : vector<1x512xf32> to vector<8x512xf32>
    %14 = arith.addf %12, %13 : vector<8x512xf32>
    %cst_10 = arith.constant 0.000000e+00 : f32
    %15 = vector.broadcast %cst_10 : f32 to vector<8x512xf32>
    %16 = arith.maximumf %14, %15 : vector<8x512xf32>
    %17 = arith.truncf %16 : vector<8x512xf32> to vector<8x512xbf16>
    %18 = vector.extract_strided_slice %17 {offsets = [0, 0], sizes = [8, 256], strides = [1, 1]} : vector<8x512xbf16> to vector<8x256xbf16>
    %c0_11 = arith.constant 0 : index
    %c0_12 = arith.constant 0 : index
    %19 = vector.load %arg4[%c0_11, %c0_12] : memref<512x256xbf16, #tpu.memory_space<vmem>>, vector<256x256xbf16>
    %cst_13 = arith.constant dense<0.000000e+00> : vector<8x256xf32>
    %20 = tpu.matmul %18, %19, %cst_13 {dimension_numbers = #tpu.dot_dimension_numbers<[1], [0], [0], [1], [0, 0, 1, 1], [], []>} : vector<8x256xbf16>, vector<256x256xbf16>, vector<8x256xf32> -> vector<8x256xf32>
    %21 = vector.extract_strided_slice %17 {offsets = [0, 256], sizes = [8, 256], strides = [1, 1]} : vector<8x512xbf16> to vector<8x256xbf16>
    %c256 = arith.constant 256 : index
    %c0_14 = arith.constant 0 : index
    %22 = vector.load %arg4[%c256, %c0_14] : memref<512x256xbf16, #tpu.memory_space<vmem>>, vector<256x256xbf16>
    %cst_15 = arith.constant dense<0.000000e+00> : vector<8x256xf32>
    %23 = tpu.matmul %21, %22, %cst_15 {dimension_numbers = #tpu.dot_dimension_numbers<[1], [0], [0], [1], [0, 0, 1, 1], [], []>} : vector<8x256xbf16>, vector<256x256xbf16>, vector<8x256xf32> -> vector<8x256xf32>
    %24 = vector.extract_strided_slice %2 {offsets = [0, 0], sizes = [1, 256], strides = [1, 1]} : vector<1x512xf32> to vector<1x256xf32>
    %25 = vector.broadcast %24 : vector<1x256xf32> to vector<8x256xf32>
    %26 = arith.addf %20, %25 : vector<8x256xf32>
    %cst_16 = arith.constant 0.000000e+00 : f32
    %27 = vector.broadcast %cst_16 : f32 to vector<8x256xf32>
    %28 = arith.maximumf %26, %27 : vector<8x256xf32>
    %29 = vector.extract_strided_slice %2 {offsets = [0, 256], sizes = [1, 256], strides = [1, 1]} : vector<1x512xf32> to vector<1x256xf32>
    %30 = vector.broadcast %29 : vector<1x256xf32> to vector<8x256xf32>
    %31 = arith.addf %23, %30 : vector<8x256xf32>
    %cst_17 = arith.constant 0.000000e+00 : f32
    %32 = vector.broadcast %cst_17 : f32 to vector<8x256xf32>
    %33 = arith.maximumf %31, %32 : vector<8x256xf32>
    %34 = tpu.concatenate %28, %33 in 1 : vector<8x256xf32>, vector<8x256xf32> -> vector<8x512xf32>
    %35 = arith.truncf %34 : vector<8x512xf32> to vector<8x512xbf16>
    %c0_18 = arith.constant 0 : index
    %c0_19 = arith.constant 0 : index
    %36 = vector.load %arg5[%c0_18, %c0_19] : memref<512x2xbf16, #tpu.memory_space<vmem>>, vector<512x2xbf16>
    %cst_20 = arith.constant dense<0.000000e+00> : vector<8x2xf32>
    %37 = tpu.matmul %35, %36, %cst_20 {dimension_numbers = #tpu.dot_dimension_numbers<[1], [0], [0], [1], [0, 0, 1, 1], [], []>} : vector<8x512xbf16>, vector<512x2xbf16>, vector<8x2xf32> -> vector<8x2xf32>
    %38 = vector.broadcast %3 : vector<1x2xf32> to vector<8x2xf32>
    %39 = arith.addf %37, %38 : vector<8x2xf32>
    %c0_21 = arith.constant 0 : index
    %c0_22 = arith.constant 0 : index
    %40 = vector.load %arg7[%c0_21, %c0_22] : memref<8x2xf32, #tpu.memory_space<vmem>>, vector<8x2xf32>
    tpu.vector_store %arg7[%c0_21, %c0_22], %39 {strides = array<i32>} : memref<8x2xf32, #tpu.memory_space<vmem>>, vector<8x2xf32>,
    return
  }
}

</mosaic_0001>

<llo_original>
// kernel: tpu_custom_call.1
$region0: #{tpu_custom_call.1}
  #allocation0 [shape = 'u32[]', space=smem, size = 0x4, offset = 0x4, fixed_abs, tag = 'smem constant byte address 0x4 - core index']
  #allocation1 [shape = 'u32[72,128]{1,0:T(1,128)}', space=vmem, size = 0x9000, scoped, tag = 'internal scratch']
  %s0 = inlined_call_operand.vmem [shape: f32[8,12], index: 0, kind: input, shape index: {}]
  %s1 = inlined_call_operand.vmem [shape: f32[8,4], index: 1, kind: input, shape index: {}]
  %s2 = inlined_call_operand.vmem [shape: bf16[12,512], index: 2, kind: input, shape index: {}]
  %s3 = inlined_call_operand.vmem [shape: bf16[4,512], index: 3, kind: input, shape index: {}]
  %s4 = inlined_call_operand.hbm [shape: bf16[512,256], index: 4, kind: input, shape index: {}]
  %s5 = inlined_call_operand.vmem [shape: bf16[512,2], index: 5, kind: input, shape index: {}]
  %s6 = inlined_call_operand.vmem [shape: f32[3,512], index: 6, kind: input, shape index: {}]
  %s7 = inlined_call_operand.vmem [shape: f32[8,2], index: 7, kind: output, shape index: {}]
  %s8 = sld [smem:[#allocation0]]
  $region42: #{tpu_custom_call.1} parent=0
    _
  %s10 = ssub.s32 1, %s8
  %s11 = scalar_select 0, %s10, %s8
  $region1: #{tpu_custom_call.1} parent=0
    #allocation2 [shape = 'u8[262144]{0}', space=vmem, size = 0x40000, scoped, tag = 'input window, operand 4, single buffered']
    #allocation3 [shape = 's32[1]{0}', space=sflag, size = 0x4, scoped, tag = 'scoped memory for tpu_custom_call.1']
    %12 = vsyncpa [#allocation3], 0
    // Predicated region
    $region2: #{tpu_custom_call.1} parent=1 // pred_check
      _
    $region3: #{tpu_custom_call.1} parent=1 // pred_check_branch
      %14 = sbr.rel (0) target = $region5
    $region4: #{tpu_custom_call.1} parent=1 // pred_region
      _
    $region5: #{tpu_custom_call.1} parent=1 // pred_fallthru
      _
    // Predicated region
    $region6: #{tpu_custom_call.1} parent=1 // pred_check
      _
    $region7: #{tpu_custom_call.1} parent=1 // pred_check_branch
      %16 = sbr.rel (0) target = $region9
    $region8: #{tpu_custom_call.1} parent=1 // pred_region
      _
    $region9: #{tpu_custom_call.1} parent=1 // pred_fallthru
      _
    // Predicated region
    $region10: #{tpu_custom_call.1} parent=1 // pred_check
      _
    $region11: #{tpu_custom_call.1} parent=1 // pred_check_branch
      %18 = sbr.rel (0) target = $region13
    $region12: #{tpu_custom_call.1} parent=1 // pred_region
      _
    $region13: #{tpu_custom_call.1} parent=1 // pred_fallthru
      _
    // Predicated region
    $region14: #{tpu_custom_call.1} parent=1 // pred_check
      _
    $region15: #{tpu_custom_call.1} parent=1 // pred_check_branch
      %20 = sbr.rel (0) target = $region17
    $region16: #{tpu_custom_call.1} parent=1 // pred_region
      _
    $region17: #{tpu_custom_call.1} parent=1 // pred_fallthru
      _
    // Predicated region
    $region18: #{tpu_custom_call.1} parent=1 // pred_check
      _
    $region19: #{tpu_custom_call.1} parent=1 // pred_check_branch
      %22 = sbr.rel (0) target = $region21
    $region20: #{tpu_custom_call.1} parent=1 // pred_region
      %24 = vsyncadd [#allocation3], 0
      %s25 = sshll.u32 %s4, 4
      %s26 = int_to_ptr.hbm [resolvable:$true] %s25
      %s27 = sshll.u32 [#allocation2], 4
      %s28 = int_to_ptr.vmem [resolvable:$true] %s27
      %33 = dma.hbm_to_vmem [thread:$0]  %s26, 8192, %s28, [#allocation3], 128, 128, 8
    $region21: #{tpu_custom_call.1} parent=1 // pred_fallthru
      _
    // Predicated region
    $region22: #{tpu_custom_call.1} parent=1 // pred_check
      _
    $region23: #{tpu_custom_call.1} parent=1 // pred_check_branch
      %35 = sbr.rel (0) target = $region25
    $region24: #{tpu_custom_call.1} parent=1 // pred_region
      _
    $region25: #{tpu_custom_call.1} parent=1 // pred_fallthru
      _
    // Predicated region
    $region26: #{tpu_custom_call.1} parent=1 // pred_check
      _
    $region27: #{tpu_custom_call.1} parent=1 // pred_check_branch
      %37 = sbr.rel (0) target = $region29
    $region28: #{tpu_custom_call.1} parent=1 // pred_region
      _
    $region29: #{tpu_custom_call.1} parent=1 // pred_fallthru
      _
    // Predicated region
    $region30: #{tpu_custom_call.1} parent=1 // pred_check
      _
    $region31: #{tpu_custom_call.1} parent=1 // pred_check_branch
      %39 = sbr.rel (0) target = $region33
    $region32: #{tpu_custom_call.1} parent=1 // pred_region
      %41 = dma.done [#allocation3], 8192
    $region33: #{tpu_custom_call.1} parent=1 // pred_fallthru
      _
    %v43 = vld [vmem:[%s6] sm:$0x77]
    %v44 = vld [vmem:[%s6 + $0x8] sm:$0x77]
    %v45 = vld [vmem:[%s0] sm:$0xff]
    %v46 = vpack.c.bf16 %v45, %v45
    %v47 = vld [vmem:[%s1] sm:$0xff]
    %v48 = vpack.c.bf16 %v47, %v47
    %v49 = vld [vmem:[%s2] sm:$0xff]
    %v50 = vld [vmem:[%s2 + $0x8] sm:$0xff]
    %v51 = vld [vmem:[%s2 + $0x10] sm:$0x33]
    %v52 = vld [vmem:[%s2 + $0x18] sm:$0x33]
    %v53 = vld [vmem:[%s3] sm:$0xff]
    %55 = vst [vmem:[#allocation1] ss:$4 sm:$0xff] %v53
    %v56 = vld.sshfl [vmem:[#allocation1] sm:$0xff pattern:$0x73625140]
    %v57 = vld.sshfl [vmem:[#allocation1 + $0x8] sm:$0xff pattern:$0x73625140]
    %v58 = vld.sshfl [vmem:[#allocation1 + $0x10] sm:$0xff pattern:$0x73625140]
    %v59 = vld.sshfl [vmem:[#allocation1 + $0x18] sm:$0xff pattern:$0x73625140]
    %vm60 = vcmask 31744
    %v62 = vsel %vm60, %v48, 0
    %vm64 = vcmask 1041408
    %v65 = vsel %vm64, %v56, 0
    %v67 = vsel %vm64, %v57, 0
    %v69 = vsel %vm64, %v58, 0
    %v71 = vsel %vm64, %v59, 0
    %73 = vmatpush.bf16.msra.mxu0 0
    %74 = vmatpush.bf16.msra.mxu0 0
    %75 = vmatpush.bf16.msra.mxu0 0
    %76 = vmatpush.bf16.msra.mxu0 0
    %77 = vmatpush.bf16.msra.mxu0 0
    %78 = vmatpush.bf16.msra.mxu0 0
    %79 = vmatpush.bf16.msra.mxu0 0
    %80 = vmatpush.bf16.msra.mxu0 %v65
    %81 = vmatmul.bf16.gmra.mxu0 %v62
    %v82 = vpop.f32.mrf.mxu0
    %v83 = vadd.f32 0.0, %v82
    %v84 = vpop.f32.mrf.mxu0
    %85 = vdwg.mxu0
    %86 = vmatpush.bf16.msra.mxu0 0
    %87 = vmatpush.bf16.msra.mxu0 0
    %88 = vmatpush.bf16.msra.mxu0 0
    %89 = vmatpush.bf16.msra.mxu0 0
    %90 = vmatpush.bf16.msra.mxu0 0
    %91 = vmatpush.bf16.msra.mxu0 0
    %92 = vmatpush.bf16.msra.mxu0 0
    %93 = vmatpush.bf16.msra.mxu0 %v67
    %94 = vmatmul.bf16.gmra.mxu0 %v62
    %v95 = vpop.f32.mrf.mxu0
    %v96 = vadd.f32 0.0, %v95
    %v97 = vpop.f32.mrf.mxu0
    %98 = vdwg.mxu0
    %99 = vmatpush.bf16.msra.mxu0 0
    %100 = vmatpush.bf16.msra.mxu0 0
    %101 = vmatpush.bf16.msra.mxu0 0
    %102 = vmatpush.bf16.msra.mxu0 0
    %103 = vmatpush.bf16.msra.mxu0 0
    %104 = vmatpush.bf16.msra.mxu0 0
    %105 = vmatpush.bf16.msra.mxu0 0
    %106 = vmatpush.bf16.msra.mxu0 %v69
    %107 = vmatmul.bf16.gmra.mxu0 %v62
    %v108 = vpop.f32.mrf.mxu0
    %v109 = vadd.f32 0.0, %v108
    %v110 = vpop.f32.mrf.mxu0
    %111 = vdwg.mxu0
    %112 = vmatpush.bf16.msra.mxu0 0
    %113 = vmatpush.bf16.msra.mxu0 0
    %114 = vmatpush.bf16.msra.mxu0 0
    %115 = vmatpush.bf16.msra.mxu0 0
    %116 = vmatpush.bf16.msra.mxu0 0
    %117 = vmatpush.bf16.msra.mxu0 0
    %118 = vmatpush.bf16.msra.mxu0 0
    %119 = vmatpush.bf16.msra.mxu0 %v71
    %120 = vmatmul.bf16.gmra.mxu0 %v62
    %v121 = vpop.f32.mrf.mxu0
    %v122 = vadd.f32 0.0, %v121
    %v123 = vpop.f32.mrf.mxu0
    %124 = vdwg.mxu0
    %v129 = vunpack.c.l.b16 %v49
    %v130 = vunpack.c.h.b16 %v49
    %v131 = vunpack.c.l.b16 %v50
    %v132 = vunpack.c.h.b16 %v50
    %v133 = vunpack.c.l.b16 %v51
    %v134 = vunpack.c.h.b16 %v51
    %v135 = vunpack.c.l.b16 %v52
    %v136 = vunpack.c.h.b16 %v52
    %v137 = vpack.c.b16 %v133, %v129
    %v138 = vpack.c.b16 %v134, %v130
    %v139 = vpack.c.b16 %v135, %v131
    %v140 = vpack.c.b16 %v136, %v132
    %vm141 = vcmask 97280
    %v143 = vsel %vm141, %v46, 0
    %vm145 = vcmask 1045504
    %v147 = vsel %vm145, %v137, 0
    %v150 = vsel %vm145, %v138, 0
    %v153 = vsel %vm145, %v139, 0
    %v156 = vsel %vm145, %v140, 0
    %158 = vmatpush.bf16.msra.mxu0 0
    %159 = vmatpush.bf16.msra.mxu0 0
    %160 = vmatpush.bf16.msra.mxu0 0
    %161 = vmatpush.bf16.msra.mxu0 0
    %162 = vmatpush.bf16.msra.mxu0 0
    %163 = vmatpush.bf16.msra.mxu0 0
    %164 = vmatpush.bf16.msra.mxu0 0
    %165 = vmatpush.bf16.msra.mxu0 %v147
    %166 = vmatmul.bf16.gmra.mxu0 %v143
    %v167 = vpop.f32.mrf.mxu0
    %v168 = vadd.f32 %v83, %v167
    %v169 = vpop.f32.mrf.mxu0
    %170 = vdwg.mxu0
    %171 = vmatpush.bf16.msra.mxu0 0
    %172 = vmatpush.bf16.msra.mxu0 0
    %173 = vmatpush.bf16.msra.mxu0 0
    %174 = vmatpush.bf16.msra.mxu0 0
    %175 = vmatpush.bf16.msra.mxu0 0
    %176 = vmatpush.bf16.msra.mxu0 0
    %177 = vmatpush.bf16.msra.mxu0 0
    %178 = vmatpush.bf16.msra.mxu0 %v150
    %179 = vmatmul.bf16.gmra.mxu0 %v143
    %v180 = vpop.f32.mrf.mxu0
    %v181 = vadd.f32 %v96, %v180
    %v182 = vpop.f32.mrf.mxu0
    %183 = vdwg.mxu0
    %184 = vmatpush.bf16.msra.mxu0 0
    %185 = vmatpush.bf16.msra.mxu0 0
    %186 = vmatpush.bf16.msra.mxu0 0
    %187 = vmatpush.bf16.msra.mxu0 0
    %188 = vmatpush.bf16.msra.mxu0 0
    %189 = vmatpush.bf16.msra.mxu0 0
    %190 = vmatpush.bf16.msra.mxu0 0
    %191 = vmatpush.bf16.msra.mxu0 %v153
    %192 = vmatmul.bf16.gmra.mxu0 %v143
    %v193 = vpop.f32.mrf.mxu0
    %v194 = vadd.f32 %v109, %v193
    %v195 = vpop.f32.mrf.mxu0
    %196 = vdwg.mxu0
    %197 = vmatpush.bf16.msra.mxu0 0
    %198 = vmatpush.bf16.msra.mxu0 0
    %199 = vmatpush.bf16.msra.mxu0 0
    %200 = vmatpush.bf16.msra.mxu0 0
    %201 = vmatpush.bf16.msra.mxu0 0
    %202 = vmatpush.bf16.msra.mxu0 0
    %203 = vmatpush.bf16.msra.mxu0 0
    %204 = vmatpush.bf16.msra.mxu0 %v156
    %205 = vmatmul.bf16.gmra.mxu0 %v143
    %v206 = vpop.f32.mrf.mxu0
    %v207 = vadd.f32 %v122, %v206
    %v208 = vpop.f32.mrf.mxu0
    %209 = vdwg.mxu0
    %v212 = vperm.slane %v43, 0
    %v213 = vperm.slane %v43, 4
    %v214 = vperm.slane %v44, 0
    %v215 = vperm.slane %v44, 4
    %v220 = vperm.slane %v212, 0
    %v221 = vperm.slane %v213, 0
    %v222 = vperm.slane %v214, 0
    %v223 = vperm.slane %v215, 0
    %v224 = vadd.f32 %v168, %v220
    %v225 = vadd.f32 %v181, %v221
    %v226 = vadd.f32 %v194, %v222
    %v227 = vadd.f32 %v207, %v223
    %v228 = vmax.f32 %v224, 0.0
    %v229 = vmax.f32 %v225, 0.0
    %v230 = vmax.f32 %v226, 0.0
    %v231 = vmax.f32 %v227, 0.0
    %v232 = vpack.c.bf16 %v229, %v228
    %v233 = vpack.c.bf16 %v231, %v230
    %v234 = vld [vmem:[#allocation2] sm:$0xff]
    %v235 = vld [vmem:[#allocation2 + $0x8] sm:$0xff]
    %v236 = vld [vmem:[#allocation2 + $0x10] sm:$0xff]
    %v237 = vld [vmem:[#allocation2 + $0x18] sm:$0xff]
    %v238 = vld [vmem:[#allocation2 + $0x20] sm:$0xff]
    %v239 = vld [vmem:[#allocation2 + $0x28] sm:$0xff]
    %v240 = vld [vmem:[#allocation2 + $0x30] sm:$0xff]
    %v241 = vld [vmem:[#allocation2 + $0x38] sm:$0xff]
    %v242 = vld [vmem:[#allocation2 + $0x40] sm:$0xff]
    %v243 = vld [vmem:[#allocation2 + $0x48] sm:$0xff]
    %v244 = vld [vmem:[#allocation2 + $0x50] sm:$0xff]
    %v245 = vld [vmem:[#allocation2 + $0x58] sm:$0xff]
    %v246 = vld [vmem:[#allocation2 + $0x60] sm:$0xff]
    %v247 = vld [vmem:[#allocation2 + $0x68] sm:$0xff]
    %v248 = vld [vmem:[#allocation2 + $0x70] sm:$0xff]
    %v249 = vld [vmem:[#allocation2 + $0x78] sm:$0xff]
    %v250 = vld [vmem:[#allocation2 + $0x80] sm:$0xff]
    %v251 = vld [vmem:[#allocation2 + $0x88] sm:$0xff]
    %v252 = vld [vmem:[#allocation2 + $0x90] sm:$0xff]
    %v253 = vld [vmem:[#allocation2 + $0x98] sm:$0xff]
    %v254 = vld [vmem:[#allocation2 + $0xa0] sm:$0xff]
    %v255 = vld [vmem:[#allocation2 + $0xa8] sm:$0xff]
    %v256 = vld [vmem:[#allocation2 + $0xb0] sm:$0xff]
    %v257 = vld [vmem:[#allocation2 + $0xb8] sm:$0xff]
    %v258 = vld [vmem:[#allocation2 + $0xc0] sm:$0xff]
    %v259 = vld [vmem:[#allocation2 + $0xc8] sm:$0xff]
    %v260 = vld [vmem:[#allocation2 + $0xd0] sm:$0xff]
    %v261 = vld [vmem:[#allocation2 + $0xd8] sm:$0xff]
    %v262 = vld [vmem:[#allocation2 + $0xe0] sm:$0xff]
    %v263 = vld [vmem:[#allocation2 + $0xe8] sm:$0xff]
    %v264 = vld [vmem:[#allocation2 + $0xf0] sm:$0xff]
    %v265 = vld [vmem:[#allocation2 + $0xf8] sm:$0xff]
    %v266 = vld [vmem:[#allocation2 + $0x100] sm:$0xff]
    %v267 = vld [vmem:[#allocation2 + $0x108] sm:$0xff]
    %v268 = vld [vmem:[#allocation2 + $0x110] sm:$0xff]
    %v269 = vld [vmem:[#allocation2 + $0x118] sm:$0xff]
    %v270 = vld [vmem:[#allocation2 + $0x120] sm:$0xff]
    %v271 = vld [vmem:[#allocation2 + $0x128] sm:$0xff]
    %v272 = vld [vmem:[#allocation2 + $0x130] sm:$0xff]
    %v273 = vld [vmem:[#allocation2 + $0x138] sm:$0xff]
    %v274 = vld [vmem:[#allocation2 + $0x140] sm:$0xff]
    %v275 = vld [vmem:[#allocation2 + $0x148] sm:$0xff]
    %v276 = vld [vmem:[#allocation2 + $0x150] sm:$0xff]
    %v277 = vld [vmem:[#allocation2 + $0x158] sm:$0xff]
    %v278 = vld [vmem:[#allocation2 + $0x160] sm:$0xff]
    %v279 = vld [vmem:[#allocation2 + $0x168] sm:$0xff]
    %v280 = vld [vmem:[#allocation2 + $0x170] sm:$0xff]
    %v281 = vld [vmem:[#allocation2 + $0x178] sm:$0xff]
    %v282 = vld [vmem:[#allocation2 + $0x180] sm:$0xff]
    %v283 = vld [vmem:[#allocation2 + $0x188] sm:$0xff]
    %v284 = vld [vmem:[#allocation2 + $0x190] sm:$0xff]
    %v285 = vld [vmem:[#allocation2 + $0x198] sm:$0xff]
    %v286 = vld [vmem:[#allocation2 + $0x1a0] sm:$0xff]
    %v287 = vld [vmem:[#allocation2 + $0x1a8] sm:$0xff]
    %v288 = vld [vmem:[#allocation2 + $0x1b0] sm:$0xff]
    %v289 = vld [vmem:[#allocation2 + $0x1b8] sm:$0xff]
    %v290 = vld [vmem:[#allocation2 + $0x1c0] sm:$0xff]
    %v291 = vld [vmem:[#allocation2 + $0x1c8] sm:$0xff]
    %v292 = vld [vmem:[#allocation2 + $0x1d0] sm:$0xff]
    %v293 = vld [vmem:[#allocation2 + $0x1d8] sm:$0xff]
    %v294 = vld [vmem:[#allocation2 + $0x1e0] sm:$0xff]
    %v295 = vld [vmem:[#allocation2 + $0x1e8] sm:$0xff]
    %v296 = vld [vmem:[#allocation2 + $0x1f0] sm:$0xff]
    %v297 = vld [vmem:[#allocation2 + $0x1f8] sm:$0xff]
    %v298 = vperm.slane %v43, 1
    %v299 = vperm.slane %v43, 5
    %v302 = vperm.slane %v298, 1
    %v303 = vperm.slane %v299, 1
    %v305 = vunpack.c.l.b16 %v232
    %v306 = vunpack.c.h.b16 %v232
    %v307 = vpack.c.b16 %v305, %v305
    %v308 = vpack.c.b16 %v306, %v306
    %v343 = vunpack.c.l.b16 %v234
    %v344 = vunpack.c.h.b16 %v234
    %v345 = vunpack.c.l.b16 %v235
    %v346 = vunpack.c.h.b16 %v235
    %v347 = vunpack.c.l.b16 %v236
    %v348 = vunpack.c.h.b16 %v236
    %v349 = vunpack.c.l.b16 %v237
    %v350 = vunpack.c.h.b16 %v237
    %v351 = vunpack.c.l.b16 %v238
    %v352 = vunpack.c.h.b16 %v238
    %v353 = vunpack.c.l.b16 %v239
    %v354 = vunpack.c.h.b16 %v239
    %v355 = vunpack.c.l.b16 %v240
    %v356 = vunpack.c.h.b16 %v240
    %v357 = vunpack.c.l.b16 %v241
    %v358 = vunpack.c.h.b16 %v241
    %v359 = vunpack.c.l.b16 %v242
    %v360 = vunpack.c.h.b16 %v242
    %v361 = vunpack.c.l.b16 %v243
    %v362 = vunpack.c.h.b16 %v243
    %v363 = vunpack.c.l.b16 %v244
    %v364 = vunpack.c.h.b16 %v244
    %v365 = vunpack.c.l.b16 %v245
    %v366 = vunpack.c.h.b16 %v245
    %v367 = vunpack.c.l.b16 %v246
    %v368 = vunpack.c.h.b16 %v246
    %v369 = vunpack.c.l.b16 %v247
    %v370 = vunpack.c.h.b16 %v247
    %v371 = vunpack.c.l.b16 %v248
    %v372 = vunpack.c.h.b16 %v248
    %v373 = vunpack.c.l.b16 %v249
    %v374 = vunpack.c.h.b16 %v249
    %v375 = vunpack.c.l.b16 %v250
    %v376 = vunpack.c.h.b16 %v250
    %v377 = vunpack.c.l.b16 %v251
    %v378 = vunpack.c.h.b16 %v251
    %v379 = vunpack.c.l.b16 %v252
    %v380 = vunpack.c.h.b16 %v252
    %v381 = vunpack.c.l.b16 %v253
    %v382 = vunpack.c.h.b16 %v253
    %v383 = vunpack.c.l.b16 %v254
    %v384 = vunpack.c.h.b16 %v254
    %v385 = vunpack.c.l.b16 %v255
    %v386 = vunpack.c.h.b16 %v255
    %v387 = vunpack.c.l.b16 %v256
    %v388 = vunpack.c.h.b16 %v256
    %v389 = vunpack.c.l.b16 %v257
    %v390 = vunpack.c.h.b16 %v257
    %v391 = vunpack.c.l.b16 %v258
    %v392 = vunpack.c.h.b16 %v258
    %v393 = vunpack.c.l.b16 %v259
    %v394 = vunpack.c.h.b16 %v259
    %v395 = vunpack.c.l.b16 %v260
    %v396 = vunpack.c.h.b16 %v260
    %v397 = vunpack.c.l.b16 %v261
    %v398 = vunpack.c.h.b16 %v261
    %v399 = vunpack.c.l.b16 %v262
    %v400 = vunpack.c.h.b16 %v262
    %v401 = vunpack.c.l.b16 %v263
    %v402 = vunpack.c.h.b16 %v263
    %v403 = vunpack.c.l.b16 %v264
    %v404 = vunpack.c.h.b16 %v264
    %v405 = vunpack.c.l.b16 %v265
    %v406 = vunpack.c.h.b16 %v265
    %v407 = vpack.c.b16 %v345, %v343
    %v408 = vpack.c.b16 %v346, %v344
    %v409 = vpack.c.b16 %v349, %v347
    %v410 = vpack.c.b16 %v350, %v348
    %v411 = vpack.c.b16 %v353, %v351
    %v412 = vpack.c.b16 %v354, %v352
    %v413 = vpack.c.b16 %v357, %v355
    %v414 = vpack.c.b16 %v358, %v356
    %v415 = vpack.c.b16 %v361, %v359
    %v416 = vpack.c.b16 %v362, %v360
    %v417 = vpack.c.b16 %v365, %v363
    %v418 = vpack.c.b16 %v366, %v364
    %v419 = vpack.c.b16 %v369, %v367
    %v420 = vpack.c.b16 %v370, %v368
    %v421 = vpack.c.b16 %v373, %v371
    %v422 = vpack.c.b16 %v374, %v372
    %v423 = vpack.c.b16 %v377, %v375
    %v424 = vpack.c.b16 %v378, %v376
    %v425 = vpack.c.b16 %v381, %v379
    %v426 = vpack.c.b16 %v382, %v380
    %v427 = vpack.c.b16 %v385, %v383
    %v428 = vpack.c.b16 %v386, %v384
    %v429 = vpack.c.b16 %v389, %v387
    %v430 = vpack.c.b16 %v390, %v388
    %v431 = vpack.c.b16 %v393, %v391
    %v432 = vpack.c.b16 %v394, %v392
    %v433 = vpack.c.b16 %v397, %v395
    %v434 = vpack.c.b16 %v398, %v396
    %v435 = vpack.c.b16 %v401, %v399
    %v436 = vpack.c.b16 %v402, %v400
    %v437 = vpack.c.b16 %v405, %v403
    %v438 = vpack.c.b16 %v406, %v404
    %471 = vmatpush.bf16.msra.mxu0 %v421
    %472 = vmatpush.bf16.msra.mxu0 %v419
    %473 = vmatpush.bf16.msra.mxu0 %v417
    %474 = vmatpush.bf16.msra.mxu0 %v415
    %475 = vmatpush.bf16.msra.mxu0 %v413
    %476 = vmatpush.bf16.msra.mxu0 %v411
    %477 = vmatpush.bf16.msra.mxu0 %v409
    %478 = vmatpush.bf16.msra.mxu0 %v407
    %479 = vmatmul.bf16.gmra.mxu0 %v307
    %v480 = vpop.f32.mrf.mxu0
    %v481 = vadd.f32 %v302, %v480
    %v482 = vpop.f32.mrf.mxu0
    %483 = vdwg.mxu0
    %484 = vmatpush.bf16.msra.mxu0 %v437
    %485 = vmatpush.bf16.msra.mxu0 %v435
    %486 = vmatpush.bf16.msra.mxu0 %v433
    %487 = vmatpush.bf16.msra.mxu0 %v431
    %488 = vmatpush.bf16.msra.mxu0 %v429
    %489 = vmatpush.bf16.msra.mxu0 %v427
    %490 = vmatpush.bf16.msra.mxu0 %v425
    %491 = vmatpush.bf16.msra.mxu0 %v423
    %492 = vmatmul.bf16.gmra.mxu0 %v308
    %v493 = vpop.f32.mrf.mxu0
    %v494 = vadd.f32 %v481, %v493
    %v495 = vpop.f32.mrf.mxu0
    %496 = vdwg.mxu0
    %497 = vmatpush.bf16.msra.mxu0 %v422
    %498 = vmatpush.bf16.msra.mxu0 %v420
    %499 = vmatpush.bf16.msra.mxu0 %v418
    %500 = vmatpush.bf16.msra.mxu0 %v416
    %501 = vmatpush.bf16.msra.mxu0 %v414
    %502 = vmatpush.bf16.msra.mxu0 %v412
    %503 = vmatpush.bf16.msra.mxu0 %v410
    %504 = vmatpush.bf16.msra.mxu0 %v408
    %505 = vmatmul.bf16.gmra.mxu0 %v307
    %v506 = vpop.f32.mrf.mxu0
    %v507 = vadd.f32 %v303, %v506
    %v508 = vpop.f32.mrf.mxu0
    %509 = vdwg.mxu0
    %510 = vmatpush.bf16.msra.mxu0 %v438
    %511 = vmatpush.bf16.msra.mxu0 %v436
    %512 = vmatpush.bf16.msra.mxu0 %v434
    %513 = vmatpush.bf16.msra.mxu0 %v432
    %514 = vmatpush.bf16.msra.mxu0 %v430
    %515 = vmatpush.bf16.msra.mxu0 %v428
    %516 = vmatpush.bf16.msra.mxu0 %v426
    %517 = vmatpush.bf16.msra.mxu0 %v424
    %518 = vmatmul.bf16.gmra.mxu0 %v308
    %v519 = vpop.f32.mrf.mxu0
    %v520 = vadd.f32 %v507, %v519
    %v521 = vpop.f32.mrf.mxu0
    %522 = vdwg.mxu0
    %v523 = vmax.f32 %v494, 0.0
    %v524 = vmax.f32 %v520, 0.0
    %v525 = vperm.slane %v44, 1
    %v526 = vperm.slane %v44, 5
    %v529 = vperm.slane %v525, 1
    %v530 = vperm.slane %v526, 1
    %v532 = vunpack.c.l.b16 %v233
    %v533 = vunpack.c.h.b16 %v233
    %v534 = vpack.c.b16 %v532, %v532
    %v535 = vpack.c.b16 %v533, %v533
    %v570 = vunpack.c.l.b16 %v266
    %v571 = vunpack.c.h.b16 %v266
    %v572 = vunpack.c.l.b16 %v267
    %v573 = vunpack.c.h.b16 %v267
    %v574 = vunpack.c.l.b16 %v268
    %v575 = vunpack.c.h.b16 %v268
    %v576 = vunpack.c.l.b16 %v269
    %v577 = vunpack.c.h.b16 %v269
    %v578 = vunpack.c.l.b16 %v270
    %v579 = vunpack.c.h.b16 %v270
    %v580 = vunpack.c.l.b16 %v271
    %v581 = vunpack.c.h.b16 %v271
    %v582 = vunpack.c.l.b16 %v272
    %v583 = vunpack.c.h.b16 %v272
    %v584 = vunpack.c.l.b16 %v273
    %v585 = vunpack.c.h.b16 %v273
    %v586 = vunpack.c.l.b16 %v274
    %v587 = vunpack.c.h.b16 %v274
    %v588 = vunpack.c.l.b16 %v275
    %v589 = vunpack.c.h.b16 %v275
    %v590 = vunpack.c.l.b16 %v276
    %v591 = vunpack.c.h.b16 %v276
    %v592 = vunpack.c.l.b16 %v277
    %v593 = vunpack.c.h.b16 %v277
    %v594 = vunpack.c.l.b16 %v278
    %v595 = vunpack.c.h.b16 %v278
    %v596 = vunpack.c.l.b16 %v279
    %v597 = vunpack.c.h.b16 %v279
    %v598 = vunpack.c.l.b16 %v280
    %v599 = vunpack.c.h.b16 %v280
    %v600 = vunpack.c.l.b16 %v281
    %v601 = vunpack.c.h.b16 %v281
    %v602 = vunpack.c.l.b16 %v282
    %v603 = vunpack.c.h.b16 %v282
    %v604 = vunpack.c.l.b16 %v283
    %v605 = vunpack.c.h.b16 %v283
    %v606 = vunpack.c.l.b16 %v284
    %v607 = vunpack.c.h.b16 %v284
    %v608 = vunpack.c.l.b16 %v285
    %v609 = vunpack.c.h.b16 %v285
    %v610 = vunpack.c.l.b16 %v286
    %v611 = vunpack.c.h.b16 %v286
    %v612 = vunpack.c.l.b16 %v287
    %v613 = vunpack.c.h.b16 %v287
    %v614 = vunpack.c.l.b16 %v288
    %v615 = vunpack.c.h.b16 %v288
    %v616 = vunpack.c.l.b16 %v289
    %v617 = vunpack.c.h.b16 %v289
    %v618 = vunpack.c.l.b16 %v290
    %v619 = vunpack.c.h.b16 %v290
    %v620 = vunpack.c.l.b16 %v291
    %v621 = vunpack.c.h.b16 %v291
    %v622 = vunpack.c.l.b16 %v292
    %v623 = vunpack.c.h.b16 %v292
    %v624 = vunpack.c.l.b16 %v293
    %v625 = vunpack.c.h.b16 %v293
    %v626 = vunpack.c.l.b16 %v294
    %v627 = vunpack.c.h.b16 %v294
    %v628 = vunpack.c.l.b16 %v295
    %v629 = vunpack.c.h.b16 %v295
    %v630 = vunpack.c.l.b16 %v296
    %v631 = vunpack.c.h.b16 %v296
    %v632 = vunpack.c.l.b16 %v297
    %v633 = vunpack.c.h.b16 %v297
    %v634 = vpack.c.b16 %v572, %v570
    %v635 = vpack.c.b16 %v573, %v571
    %v636 = vpack.c.b16 %v576, %v574
    %v637 = vpack.c.b16 %v577, %v575
    %v638 = vpack.c.b16 %v580, %v578
    %v639 = vpack.c.b16 %v581, %v579
    %v640 = vpack.c.b16 %v584, %v582
    %v641 = vpack.c.b16 %v585, %v583
    %v642 = vpack.c.b16 %v588, %v586
    %v643 = vpack.c.b16 %v589, %v587
    %v644 = vpack.c.b16 %v592, %v590
    %v645 = vpack.c.b16 %v593, %v591
    %v646 = vpack.c.b16 %v596, %v594
    %v647 = vpack.c.b16 %v597, %v595
    %v648 = vpack.c.b16 %v600, %v598
    %v649 = vpack.c.b16 %v601, %v599
    %v650 = vpack.c.b16 %v604, %v602
    %v651 = vpack.c.b16 %v605, %v603
    %v652 = vpack.c.b16 %v608, %v606
    %v653 = vpack.c.b16 %v609, %v607
    %v654 = vpack.c.b16 %v612, %v610
    %v655 = vpack.c.b16 %v613, %v611
    %v656 = vpack.c.b16 %v616, %v614
    %v657 = vpack.c.b16 %v617, %v615
    %v658 = vpack.c.b16 %v620, %v618
    %v659 = vpack.c.b16 %v621, %v619
    %v660 = vpack.c.b16 %v624, %v622
    %v661 = vpack.c.b16 %v625, %v623
    %v662 = vpack.c.b16 %v628, %v626
    %v663 = vpack.c.b16 %v629, %v627
    %v664 = vpack.c.b16 %v632, %v630
    %v665 = vpack.c.b16 %v633, %v631
    %698 = vmatpush.bf16.msra.mxu0 %v648
    %699 = vmatpush.bf16.msra.mxu0 %v646
    %700 = vmatpush.bf16.msra.mxu0 %v644
    %701 = vmatpush.bf16.msra.mxu0 %v642
    %702 = vmatpush.bf16.msra.mxu0 %v640
    %703 = vmatpush.bf16.msra.mxu0 %v638
    %704 = vmatpush.bf16.msra.mxu0 %v636
    %705 = vmatpush.bf16.msra.mxu0 %v634
    %706 = vmatmul.bf16.gmra.mxu0 %v534
    %v707 = vpop.f32.mrf.mxu0
    %v708 = vadd.f32 %v529, %v707
    %v709 = vpop.f32.mrf.mxu0
    %710 = vdwg.mxu0
    %711 = vmatpush.bf16.msra.mxu0 %v664
    %712 = vmatpush.bf16.msra.mxu0 %v662
    %713 = vmatpush.bf16.msra.mxu0 %v660
    %714 = vmatpush.bf16.msra.mxu0 %v658
    %715 = vmatpush.bf16.msra.mxu0 %v656
    %716 = vmatpush.bf16.msra.mxu0 %v654
    %717 = vmatpush.bf16.msra.mxu0 %v652
    %718 = vmatpush.bf16.msra.mxu0 %v650
    %719 = vmatmul.bf16.gmra.mxu0 %v535
    %v720 = vpop.f32.mrf.mxu0
    %v721 = vadd.f32 %v708, %v720
    %v722 = vpop.f32.mrf.mxu0
    %723 = vdwg.mxu0
    %724 = vmatpush.bf16.msra.mxu0 %v649
    %725 = vmatpush.bf16.msra.mxu0 %v647
    %726 = vmatpush.bf16.msra.mxu0 %v645
    %727 = vmatpush.bf16.msra.mxu0 %v643
    %728 = vmatpush.bf16.msra.mxu0 %v641
    %729 = vmatpush.bf16.msra.mxu0 %v639
    %730 = vmatpush.bf16.msra.mxu0 %v637
    %731 = vmatpush.bf16.msra.mxu0 %v635
    %732 = vmatmul.bf16.gmra.mxu0 %v534
    %v733 = vpop.f32.mrf.mxu0
    %v734 = vadd.f32 %v530, %v733
    %v735 = vpop.f32.mrf.mxu0
    %736 = vdwg.mxu0
    %737 = vmatpush.bf16.msra.mxu0 %v665
    %738 = vmatpush.bf16.msra.mxu0 %v663
    %739 = vmatpush.bf16.msra.mxu0 %v661
    %740 = vmatpush.bf16.msra.mxu0 %v659
    %741 = vmatpush.bf16.msra.mxu0 %v657
    %742 = vmatpush.bf16.msra.mxu0 %v655
    %743 = vmatpush.bf16.msra.mxu0 %v653
    %744 = vmatpush.bf16.msra.mxu0 %v651
    %745 = vmatmul.bf16.gmra.mxu0 %v535
    %v746 = vpop.f32.mrf.mxu0
    %v747 = vadd.f32 %v734, %v746
    %v748 = vpop.f32.mrf.mxu0
    %749 = vdwg.mxu0
    %v750 = vmax.f32 %v721, 0.0
    %v751 = vmax.f32 %v747, 0.0
    %v752 = vpack.c.bf16 %v523, %v523
    %v753 = vpack.c.bf16 %v524, %v524
    %v754 = vpack.c.bf16 %v750, %v750
    %v755 = vpack.c.bf16 %v751, %v751
    %v756 = vld [vmem:[%s5] sm:$0xf]
    %v757 = vld [vmem:[%s5 + $0x4] sm:$0xf]
    %v758 = vld [vmem:[%s5 + $0x8] sm:$0xf]
    %v759 = vld [vmem:[%s5 + $0xc] sm:$0xf]
    %v760 = vld [vmem:[%s5 + $0x10] sm:$0xf]
    %v761 = vld [vmem:[%s5 + $0x14] sm:$0xf]
    %v762 = vld [vmem:[%s5 + $0x18] sm:$0xf]
    %v763 = vld [vmem:[%s5 + $0x1c] sm:$0xf]
    %v764 = vld [vmem:[%s5 + $0x20] sm:$0xf]
    %v765 = vld [vmem:[%s5 + $0x24] sm:$0xf]
    %v766 = vld [vmem:[%s5 + $0x28] sm:$0xf]
    %v767 = vld [vmem:[%s5 + $0x2c] sm:$0xf]
    %v768 = vld [vmem:[%s5 + $0x30] sm:$0xf]
    %v769 = vld [vmem:[%s5 + $0x34] sm:$0xf]
    %v770 = vld [vmem:[%s5 + $0x38] sm:$0xf]
    %v771 = vld [vmem:[%s5 + $0x3c] sm:$0xf]
    %v772 = vld [vmem:[%s5 + $0x40] sm:$0xf]
    %v773 = vld [vmem:[%s5 + $0x44] sm:$0xf]
    %v774 = vld [vmem:[%s5 + $0x48] sm:$0xf]
    %v775 = vld [vmem:[%s5 + $0x4c] sm:$0xf]
    %v776 = vld [vmem:[%s5 + $0x50] sm:$0xf]
    %v777 = vld [vmem:[%s5 + $0x54] sm:$0xf]
    %v778 = vld [vmem:[%s5 + $0x58] sm:$0xf]
    %v779 = vld [vmem:[%s5 + $0x5c] sm:$0xf]
    %v780 = vld [vmem:[%s5 + $0x60] sm:$0xf]
    %v781 = vld [vmem:[%s5 + $0x64] sm:$0xf]
    %v782 = vld [vmem:[%s5 + $0x68] sm:$0xf]
    %v783 = vld [vmem:[%s5 + $0x6c] sm:$0xf]
    %v784 = vld [vmem:[%s5 + $0x70] sm:$0xf]
    %v785 = vld [vmem:[%s5 + $0x74] sm:$0xf]
    %v786 = vld [vmem:[%s5 + $0x78] sm:$0xf]
    %v787 = vld [vmem:[%s5 + $0x7c] sm:$0xf]
    %v788 = vld [vmem:[%s5 + $0x80] sm:$0xf]
    %v789 = vld [vmem:[%s5 + $0x84] sm:$0xf]
    %v790 = vld [vmem:[%s5 + $0x88] sm:$0xf]
    %v791 = vld [vmem:[%s5 + $0x8c] sm:$0xf]
    %v792 = vld [vmem:[%s5 + $0x90] sm:$0xf]
    %v793 = vld [vmem:[%s5 + $0x94] sm:$0xf]
    %v794 = vld [vmem:[%s5 + $0x98] sm:$0xf]
    %v795 = vld [vmem:[%s5 + $0x9c] sm:$0xf]
    %v796 = vld [vmem:[%s5 + $0xa0] sm:$0xf]
    %v797 = vld [vmem:[%s5 + $0xa4] sm:$0xf]
    %v798 = vld [vmem:[%s5 + $0xa8] sm:$0xf]
    %v799 = vld [vmem:[%s5 + $0xac] sm:$0xf]
    %v800 = vld [vmem:[%s5 + $0xb0] sm:$0xf]
    %v801 = vld [vmem:[%s5 + $0xb4] sm:$0xf]
    %v802 = vld [vmem:[%s5 + $0xb8] sm:$0xf]
    %v803 = vld [vmem:[%s5 + $0xbc] sm:$0xf]
    %v804 = vld [vmem:[%s5 + $0xc0] sm:$0xf]
    %v805 = vld [vmem:[%s5 + $0xc4] sm:$0xf]
    %v806 = vld [vmem:[%s5 + $0xc8] sm:$0xf]
    %v807 = vld [vmem:[%s5 + $0xcc] sm:$0xf]
    %v808 = vld [vmem:[%s5 + $0xd0] sm:$0xf]
    %v809 = vld [vmem:[%s5 + $0xd4] sm:$0xf]
    %v810 = vld [vmem:[%s5 + $0xd8] sm:$0xf]
    %v811 = vld [vmem:[%s5 + $0xdc] sm:$0xf]
    %v812 = vld [vmem:[%s5 + $0xe0] sm:$0xf]
    %v813 = vld [vmem:[%s5 + $0xe4] sm:$0xf]
    %v814 = vld [vmem:[%s5 + $0xe8] sm:$0xf]
    %v815 = vld [vmem:[%s5 + $0xec] sm:$0xf]
    %v816 = vld [vmem:[%s5 + $0xf0] sm:$0xf]
    %v817 = vld [vmem:[%s5 + $0xf4] sm:$0xf]
    %v818 = vld [vmem:[%s5 + $0xf8] sm:$0xf]
    %v819 = vld [vmem:[%s5 + $0xfc] sm:$0xf]
    %v820 = vperm.slane %v43, 2
    %v885 = vunpack.c.l.b16 %v756
    %v886 = vunpack.c.l.b16 %v757
    %v887 = vunpack.c.l.b16 %v758
    %v888 = vunpack.c.l.b16 %v759
    %v889 = vunpack.c.l.b16 %v760
    %v890 = vunpack.c.l.b16 %v761
    %v891 = vunpack.c.l.b16 %v762
    %v892 = vunpack.c.l.b16 %v763
    %v893 = vunpack.c.l.b16 %v764
    %v894 = vunpack.c.l.b16 %v765
    %v895 = vunpack.c.l.b16 %v766
    %v896 = vunpack.c.l.b16 %v767
    %v897 = vunpack.c.l.b16 %v768
    %v898 = vunpack.c.l.b16 %v769
    %v899 = vunpack.c.l.b16 %v770
    %v900 = vunpack.c.l.b16 %v771
    %v901 = vunpack.c.l.b16 %v772
    %v902 = vunpack.c.l.b16 %v773
    %v903 = vunpack.c.l.b16 %v774
    %v904 = vunpack.c.l.b16 %v775
    %v905 = vunpack.c.l.b16 %v776
    %v906 = vunpack.c.l.b16 %v777
    %v907 = vunpack.c.l.b16 %v778
    %v908 = vunpack.c.l.b16 %v779
    %v909 = vunpack.c.l.b16 %v780
    %v910 = vunpack.c.l.b16 %v781
    %v911 = vunpack.c.l.b16 %v782
    %v912 = vunpack.c.l.b16 %v783
    %v913 = vunpack.c.l.b16 %v784
    %v914 = vunpack.c.l.b16 %v785
    %v915 = vunpack.c.l.b16 %v786
    %v916 = vunpack.c.l.b16 %v787
    %v917 = vunpack.c.l.b16 %v788
    %v918 = vunpack.c.l.b16 %v789
    %v919 = vunpack.c.l.b16 %v790
    %v920 = vunpack.c.l.b16 %v791
    %v921 = vunpack.c.l.b16 %v792
    %v922 = vunpack.c.l.b16 %v793
    %v923 = vunpack.c.l.b16 %v794
    %v924 = vunpack.c.l.b16 %v795
    %v925 = vunpack.c.l.b16 %v796
    %v926 = vunpack.c.l.b16 %v797
    %v927 = vunpack.c.l.b16 %v798
    %v928 = vunpack.c.l.b16 %v799
    %v929 = vunpack.c.l.b16 %v800
    %v930 = vunpack.c.l.b16 %v801
    %v931 = vunpack.c.l.b16 %v802
    %v932 = vunpack.c.l.b16 %v803
    %v933 = vunpack.c.l.b16 %v804
    %v934 = vunpack.c.l.b16 %v805
    %v935 = vunpack.c.l.b16 %v806
    %v936 = vunpack.c.l.b16 %v807
    %v937 = vunpack.c.l.b16 %v808
    %v938 = vunpack.c.l.b16 %v809
    %v939 = vunpack.c.l.b16 %v810
    %v940 = vunpack.c.l.b16 %v811
    %v941 = vunpack.c.l.b16 %v812
    %v942 = vunpack.c.l.b16 %v813
    %v943 = vunpack.c.l.b16 %v814
    %v944 = vunpack.c.l.b16 %v815
    %v945 = vunpack.c.l.b16 %v816
    %v946 = vunpack.c.l.b16 %v817
    %v947 = vunpack.c.l.b16 %v818
    %v948 = vunpack.c.l.b16 %v819
    %v949 = vpack.c.b16 %v886, %v885
    %v950 = vpack.c.b16 %v888, %v887
    %v951 = vpack.c.b16 %v890, %v889
    %v952 = vpack.c.b16 %v892, %v891
    %v953 = vpack.c.b16 %v894, %v893
    %v954 = vpack.c.b16 %v896, %v895
    %v955 = vpack.c.b16 %v898, %v897
    %v956 = vpack.c.b16 %v900, %v899
    %v957 = vpack.c.b16 %v902, %v901
    %v958 = vpack.c.b16 %v904, %v903
    %v959 = vpack.c.b16 %v906, %v905
    %v960 = vpack.c.b16 %v908, %v907
    %v961 = vpack.c.b16 %v910, %v909
    %v962 = vpack.c.b16 %v912, %v911
    %v963 = vpack.c.b16 %v914, %v913
    %v964 = vpack.c.b16 %v916, %v915
    %v965 = vpack.c.b16 %v918, %v917
    %v966 = vpack.c.b16 %v920, %v919
    %v967 = vpack.c.b16 %v922, %v921
    %v968 = vpack.c.b16 %v924, %v923
    %v969 = vpack.c.b16 %v926, %v925
    %v970 = vpack.c.b16 %v928, %v927
    %v971 = vpack.c.b16 %v930, %v929
    %v972 = vpack.c.b16 %v932, %v931
    %v973 = vpack.c.b16 %v934, %v933
    %v974 = vpack.c.b16 %v936, %v935
    %v975 = vpack.c.b16 %v938, %v937
    %v976 = vpack.c.b16 %v940, %v939
    %v977 = vpack.c.b16 %v942, %v941
    %v978 = vpack.c.b16 %v944, %v943
    %v979 = vpack.c.b16 %v946, %v945
    %v980 = vpack.c.b16 %v948, %v947
    %1013 = vmatpush.bf16.msra.mxu0 %v956
    %1014 = vmatpush.bf16.msra.mxu0 %v955
    %1015 = vmatpush.bf16.msra.mxu0 %v954
    %1016 = vmatpush.bf16.msra.mxu0 %v953
    %1017 = vmatpush.bf16.msra.mxu0 %v952
    %1018 = vmatpush.bf16.msra.mxu0 %v951
    %1019 = vmatpush.bf16.msra.mxu0 %v950
    %1020 = vmatpush.bf16.msra.mxu0 %v949
    %1021 = vmatmul.bf16.gmra.mxu0 %v752
    %v1022 = vpop.f32.mrf.mxu0
    %v1023 = vadd.f32 %v820, %v1022
    %v1024 = vpop.f32.mrf.mxu0
    %1025 = vdwg.mxu0
    %1026 = vmatpush.bf16.msra.mxu0 %v964
    %1027 = vmatpush.bf16.msra.mxu0 %v963
    %1028 = vmatpush.bf16.msra.mxu0 %v962
    %1029 = vmatpush.bf16.msra.mxu0 %v961
    %1030 = vmatpush.bf16.msra.mxu0 %v960
    %1031 = vmatpush.bf16.msra.mxu0 %v959
    %1032 = vmatpush.bf16.msra.mxu0 %v958
    %1033 = vmatpush.bf16.msra.mxu0 %v957
    %1034 = vmatmul.bf16.gmra.mxu0 %v753
    %v1035 = vpop.f32.mrf.mxu0
    %v1036 = vadd.f32 %v1023, %v1035
    %v1037 = vpop.f32.mrf.mxu0
    %1038 = vdwg.mxu0
    %1039 = vmatpush.bf16.msra.mxu0 %v972
    %1040 = vmatpush.bf16.msra.mxu0 %v971
    %1041 = vmatpush.bf16.msra.mxu0 %v970
    %1042 = vmatpush.bf16.msra.mxu0 %v969
    %1043 = vmatpush.bf16.msra.mxu0 %v968
    %1044 = vmatpush.bf16.msra.mxu0 %v967
    %1045 = vmatpush.bf16.msra.mxu0 %v966
    %1046 = vmatpush.bf16.msra.mxu0 %v965
    %1047 = vmatmul.bf16.gmra.mxu0 %v754
    %v1048 = vpop.f32.mrf.mxu0
    %v1049 = vadd.f32 %v1036, %v1048
    %v1050 = vpop.f32.mrf.mxu0
    %1051 = vdwg.mxu0
    %1052 = vmatpush.bf16.msra.mxu0 %v980
    %1053 = vmatpush.bf16.msra.mxu0 %v979
    %1054 = vmatpush.bf16.msra.mxu0 %v978
    %1055 = vmatpush.bf16.msra.mxu0 %v977
    %1056 = vmatpush.bf16.msra.mxu0 %v976
    %1057 = vmatpush.bf16.msra.mxu0 %v975
    %1058 = vmatpush.bf16.msra.mxu0 %v974
    %1059 = vmatpush.bf16.msra.mxu0 %v973
    %1060 = vmatmul.bf16.gmra.mxu0 %v755
    %v1061 = vpop.f32.mrf.mxu0
    %v1062 = vadd.f32 %v1049, %v1061
    %v1063 = vpop.f32.mrf.mxu0
    %1064 = vdwg.mxu0
    %vm1065 = vcmask 15360
    %1066 = vst.msk [vmem:[%s7] sm:$0xff] %vm1065, %v1062
    // Predicated region
    $region34: #{tpu_custom_call.1} parent=1 // pred_check
      _
    $region35: #{tpu_custom_call.1} parent=1 // pred_check_branch
      %1068 = sbr.rel (0) target = $region37
    $region36: #{tpu_custom_call.1} parent=1 // pred_region
      _
    $region37: #{tpu_custom_call.1} parent=1 // pred_fallthru
      _
    // Predicated region
    $region38: #{tpu_custom_call.1} parent=1 // pred_check
      _
    $region39: #{tpu_custom_call.1} parent=1 // pred_check_branch
      %1070 = sbr.rel (0) target = $region41
    $region40: #{tpu_custom_call.1} parent=1 // pred_region
      _
    $region41: #{tpu_custom_call.1} parent=1 // pred_fallthru
      _
    %1071 = vsyncpa [#allocation3], 1

</llo_original>
